<compile_context>
chip_gen: v6e
topology: v6e:2x2x1
jax: 0.10.0
libtpu: 0.0.40
codegen_flags: <defaults>
</compile_context>

<pallas_src>
import functools

import jax
import jax.numpy as jnp
from jax.experimental import pallas as pl
from jax.experimental.pallas import tpu as pltpu


# ---------------------------------------------------------------------------
# Fused kernel: all layers, both chains, single invocation, everything in VMEM.
# ---------------------------------------------------------------------------
def fused_cross_transformer_kernel(
    # inputs
    sm_cls_ref,    # (b, sm_dim)                f32
    lg_cls_ref,    # (b, lg_dim)                f32
    sm_wpi_ref,    # (depth, sm_dim, lg_dim)    sm_lg project_in weight stack
    sm_bpi_ref,    # (depth, 1, lg_dim)         f32
    sm_weff_ref,   # (depth, lg_dim, sm_dim)    folded  diag(gamma) @ Wv @ Wo @ Wpo
    sm_beff_ref,   # (depth, 1, sm_dim)         folded  beta@Weff + bo@Wpo + bpo
    lg_wpi_ref,    # (depth, lg_dim, sm_dim)
    lg_bpi_ref,    # (depth, 1, sm_dim)
    lg_weff_ref,   # (depth, sm_dim, lg_dim)
    lg_beff_ref,   # (depth, 1, lg_dim)
    # outputs
    sm_out_ref,    # (b, sm_dim)
    lg_out_ref,    # (b, lg_dim)
    *, depth,
):
    sm_x = sm_cls_ref[...]
    lg_x = lg_cls_ref[...]

    def block(x, wpi, bpi, weff, beff):
        cdt = wpi.dtype  # bf16-capable weight path; activations/LN stay f32
        # --- ProjectInOut.project_in ------------------------------------------------
        xp = jnp.dot(x.astype(cdt), wpi, preferred_element_type=jnp.float32) + bpi
        # --- PreNorm (LayerNorm over features, eps=1e-5); affine folded into weff ----
        mu = jnp.mean(xp, axis=-1, keepdims=True)
        var = jnp.mean((xp - mu) * (xp - mu), axis=-1, keepdims=True)
        xn = (xp - mu) * jax.lax.rsqrt(var + 1e-5)
        # --- Attention (softmax over 1 key == 1 -> out == v), to_out, project_out and
        #     LN affine folded into one matmul ----------------------------------------
        o = jnp.dot(xn.astype(cdt), weff, preferred_element_type=jnp.float32) + beff
        # --- residual (cls += block(cls)) ---------------------------------------------
        return x + o

    # Static unroll over layers (depth is small & static); cls stays in registers/VMEM
    # values the whole time — no per-layer HBM or VMEM round-trips.
    for l in range(depth):
        sm_x = block(sm_x, sm_wpi_ref[l], sm_bpi_ref[l], sm_weff_ref[l], sm_beff_ref[l])
        lg_x = block(lg_x, lg_wpi_ref[l], lg_bpi_ref[l], lg_weff_ref[l], lg_beff_ref[l])

    sm_out_ref[...] = sm_x.astype(sm_out_ref.dtype)
    lg_out_ref[...] = lg_x.astype(lg_out_ref.dtype)


_W_KEYS = ("wpi", "bpi", "weff", "beff")


@functools.partial(jax.jit, donate_argnums=(0, 1))
def fused_cross_transformer(sm_cls, lg_cls, sm_p, lg_p):
    """Single pallas_call running all layers of both chains.

    sm_p / lg_p: dicts of depth-stacked, pre-folded params:
      wpi (D, din, dout), bpi (D, 1, dout), weff (D, dout, din), beff (D, 1, din)
    """
    b, sm_dim = sm_cls.shape
    _, lg_dim = lg_cls.shape
    depth = sm_p["wpi"].shape[0]

    sm_w = [sm_p[k] for k in _W_KEYS]
    lg_w = [lg_p[k] for k in _W_KEYS]

    vmem_spec = pl.BlockSpec(memory_space=pltpu.MemorySpace.VMEM)  # whole array in VMEM
    n_in = 2 + len(sm_w) + len(lg_w)

    sm_out, lg_out = pl.pallas_call(
        functools.partial(fused_cross_transformer_kernel, depth=depth),
        out_shape=(
            jax.ShapeDtypeStruct((b, sm_dim), jnp.float32),
            jax.ShapeDtypeStruct((b, lg_dim), jnp.float32),
        ),
        in_specs=[vmem_spec] * n_in,
        out_specs=(vmem_spec, vmem_spec),
        # cls in/out share the HBM buffer; with the outer jit's donate_argnums the
        # defensive copy is elided too.
        input_output_aliases={0: 0, 1: 1},
    )(sm_cls, lg_cls, *sm_w, *lg_w)
    return sm_out, lg_out


# ---------------------------------------------------------------------------
# Parameter construction (deterministic, synthetic) + offline folding/stacking
# ---------------------------------------------------------------------------
def _init_block_params(key, dim_in, dim_out, heads, dim_head):
    """Raw parameters mirroring the torch module structure (wq/wk are dead at inference)."""
    inner = heads * dim_head
    ks = jax.random.split(key, 8)
    s = 0.05

    def lin(k, i, o):
        return s * jax.random.normal(k, (i, o), jnp.float32)

    if dim_in != dim_out:
        wpi = lin(ks[0], dim_in, dim_out)
        bpi = s * jax.random.normal(ks[1], (1, dim_out), jnp.float32)
        wpo = lin(ks[2], dim_out, dim_in)
        bpo = s * jax.random.normal(ks[3], (1, dim_in), jnp.float32)
    else:  # nn.Identity in the reference -> exact identity projection
        wpi = jnp.eye(dim_in, dtype=jnp.float32)
        bpi = jnp.zeros((1, dim_out), jnp.float32)
        wpo = jnp.eye(dim_in, dtype=jnp.float32)
        bpo = jnp.zeros((1, dim_in), jnp.float32)

    return {
        "wpi": wpi, "bpi": bpi,
        "gamma": jnp.ones((1, dim_out), jnp.float32),
        "beta": jnp.zeros((1, dim_out), jnp.float32),
        # wq/wk are mathematically dead (softmax over a single key is exactly 1.0);
        # kept here only to mirror the reference module's parameter set.
        "wq": lin(ks[4], dim_out, inner),
        "wk": lin(ks[5], dim_out, inner),
        "wv": lin(ks[6], dim_out, inner),
        "wo": lin(ks[7], inner, dim_out),
        "bo": jnp.zeros((1, dim_out), jnp.float32),
        "wpo": wpo, "bpo": bpo,
    }


def _fold_block_params(p):
    """Fold v-proj -> to_out -> project_out AND the LayerNorm affine into one matmul.

    Exact algebraic rewrite (done at HIGHEST precision):
      (xn*gamma + beta) @ (Wv Wo Wpo) + (bo Wpo + bpo)
        = xn @ (diag(gamma) Wv Wo Wpo) + (beta (Wv Wo Wpo) + bo Wpo + bpo)
    """
    dot = functools.partial(jnp.dot, precision=jax.lax.Precision.HIGHEST)
    weff = dot(p["wv"], dot(p["wo"], p["wpo"]))            # (dim_out, dim_in)
    beff = dot(p["bo"], p["wpo"]) + p["bpo"]               # (1, dim_in)
    weff = p["gamma"].reshape(-1, 1) * weff                # fold gamma
    beff = dot(p["beta"], weff) + beff                     # fold beta
    return {"wpi": p["wpi"], "bpi": p["bpi"], "weff": weff, "beff": beff}


def init_cross_transformer_params(key, depth, sm_dim, sm_heads, sm_dim_head,
                                  lg_dim, lg_heads, lg_dim_head,
                                  weight_dtype=jnp.float32):
    """weight_dtype=jnp.bfloat16 halves the dominant weight byte stream at real CrossViT dims
    (MXU is bf16-native on v5e/v6e/v7x; accumulation stays f32). Default f32 = bit-exact."""
    sm_layers, lg_layers = [], []
    for _ in range(depth):
        key, k1, k2 = jax.random.split(key, 3)
        # sm_lg: project sm_dim -> lg_dim, Attention(dim=lg_dim, heads=sm_heads, dim_head=sm_dim_head)
        sm_layers.append(_fold_block_params(
            _init_block_params(k1, sm_dim, lg_dim, sm_heads, sm_dim_head)))
        # lg_sm: project lg_dim -> sm_dim, Attention(dim=sm_dim, heads=lg_heads, dim_head=lg_dim_head)
        lg_layers.append(_fold_block_params(
            _init_block_params(k2, lg_dim, sm_dim, lg_heads, lg_dim_head)))

    def stack(layers):
        out = {k: jnp.stack([l[k] for l in layers], axis=0) for k in layers[0]}
        out["wpi"] = out["wpi"].astype(weight_dtype)
        out["weff"] = out["weff"].astype(weight_dtype)
        return out

    return {"sm_lg": stack(sm_layers), "lg_sm": stack(lg_layers)}


# ---------------------------------------------------------------------------
# CrossTransformer forward
# ---------------------------------------------------------------------------
def cross_transformer_forward(sm_tokens, lg_tokens, params, *, sm_heads, lg_heads):
    b = sm_tokens.shape[0]
    sm_cls, sm_patch = sm_tokens[:, 0, :], sm_tokens[:, 1:, :]
    lg_cls, lg_patch = lg_tokens[:, 0, :], lg_tokens[:, 1:, :]
    depth = params["sm_lg"]["wpi"].shape[0]

    # NOTE: per the reference code, context (patch tokens) is concatenated but never used,
    # because `to_kv is None` -> k, v come from the cls token itself.
    sm_cls, lg_cls = fused_cross_transformer(sm_cls, lg_cls,
                                             params["sm_lg"], params["lg_sm"])

    # Softmax over a single key is exactly 1.0 -> attention maps are all-ones; synthesize
    # them on the host instead of emitting degenerate 2-lane stores from the kernel.
    attn_list = [(jnp.ones((b, sm_heads, 1, 1), jnp.float32),
                  jnp.ones((b, lg_heads, 1, 1), jnp.float32)) for _ in range(depth)]

    sm_out = jnp.concatenate([sm_cls[:, None, :], sm_patch], axis=1)
    lg_out = jnp.concatenate([lg_cls[:, None, :], lg_patch], axis=1)
    return sm_out, lg_out, attn_list


# ---------------------------------------------------------------------------
if __name__ == "__main__":
    # Small, deterministic example shapes.
    batch = 2
    depth = 2
    sm_dim, sm_heads, sm_dim_head = 32, 2, 16
    lg_dim, lg_heads, lg_dim_head = 48, 2, 16
    sm_seq, lg_seq = 1 + 8, 1 + 8  # cls + patch tokens

    key = jax.random.PRNGKey(0)
    k_sm, k_lg, k_params = jax.random.split(key, 3)
    sm_tokens = jax.random.normal(k_sm, (batch, sm_seq, sm_dim), jnp.float32)
    lg_tokens = jax.random.normal(k_lg, (batch, lg_seq, lg_dim), jnp.float32)

    params = init_cross_transformer_params(
        k_params, depth, sm_dim, sm_heads, sm_dim_head, lg_dim, lg_heads, lg_dim_head
    )

    sm_out, lg_out, attn_list = cross_transformer_forward(
        sm_tokens, lg_tokens, params, sm_heads=sm_heads, lg_heads=lg_heads
    )

    jax.block_until_ready(sm_out)
    jax.block_until_ready(lg_out)
    for a, b_ in attn_list:
        jax.block_until_ready(a)
        jax.block_until_ready(b_)

    assert sm_out.shape == (batch, sm_seq, sm_dim)
    assert lg_out.shape == (batch, lg_seq, lg_dim)
    assert attn_list[0][0].shape == (batch, sm_heads, 1, 1)
    assert attn_list[0][1].shape == (batch, lg_heads, 1, 1)
    # patch tokens must pass through unchanged
    assert bool(jnp.allclose(sm_out[:, 1:, :], sm_tokens[:, 1:, :]))
    assert bool(jnp.allclose(lg_out[:, 1:, :], lg_tokens[:, 1:, :]))
    # outputs must be finite
    assert bool(jnp.all(jnp.isfinite(sm_out))) and bool(jnp.all(jnp.isfinite(lg_out)))
    print("KERNEL_OK")
</pallas_src>

<mosaic_0001>
module attributes {stable_mosaic.version = 11 : i64} {
  func.func @fused_cross_transformer_kernel(%arg0: memref<2x32xf32, #tpu.memory_space<vmem>>, %arg1: memref<2x48xf32, #tpu.memory_space<vmem>>, %arg2: memref<2x32x48xf32, #tpu.memory_space<vmem>>, %arg3: memref<2x1x48xf32, #tpu.memory_space<vmem>>, %arg4: memref<2x48x32xf32, #tpu.memory_space<vmem>>, %arg5: memref<2x1x32xf32, #tpu.memory_space<vmem>>, %arg6: memref<2x48x32xf32, #tpu.memory_space<vmem>>, %arg7: memref<2x1x32xf32, #tpu.memory_space<vmem>>, %arg8: memref<2x32x48xf32, #tpu.memory_space<vmem>>, %arg9: memref<2x1x48xf32, #tpu.memory_space<vmem>>, %arg10: memref<2x32xf32, #tpu.memory_space<vmem>>, %arg11: memref<2x48xf32, #tpu.memory_space<vmem>>) attributes {dimension_semantics = [], scalar_prefetch = 0 : i64, scratch_operands = 0 : i64, tpu.core_type = #tpu.core_type<tc>} {
    %c0 = arith.constant 0 : index
    %c0_0 = arith.constant 0 : index
    %0 = vector.load %arg0[%c0, %c0_0] : memref<2x32xf32, #tpu.memory_space<vmem>>, vector<2x32xf32>
    %c0_1 = arith.constant 0 : index
    %c0_2 = arith.constant 0 : index
    %1 = vector.load %arg1[%c0_1, %c0_2] : memref<2x48xf32, #tpu.memory_space<vmem>>, vector<2x48xf32>
    %c0_3 = arith.constant 0 : index
    %c0_4 = arith.constant 0 : index
    %c0_5 = arith.constant 0 : index
    %2 = vector.load %arg2[%c0_3, %c0_4, %c0_5] : memref<2x32x48xf32, #tpu.memory_space<vmem>>, vector<1x32x48xf32>
    %3 = vector.shape_cast %2 : vector<1x32x48xf32> to vector<32x48xf32>
    %c0_6 = arith.constant 0 : index
    %c0_7 = arith.constant 0 : index
    %c0_8 = arith.constant 0 : index
    %4 = vector.load %arg3[%c0_6, %c0_7, %c0_8] : memref<2x1x48xf32, #tpu.memory_space<vmem>>, vector<1x1x48xf32>
    %5 = vector.shape_cast %4 : vector<1x1x48xf32> to vector<1x48xf32>
    %c0_9 = arith.constant 0 : index
    %c0_10 = arith.constant 0 : index
    %c0_11 = arith.constant 0 : index
    %6 = vector.load %arg4[%c0_9, %c0_10, %c0_11] : memref<2x48x32xf32, #tpu.memory_space<vmem>>, vector<1x48x32xf32>
    %7 = vector.shape_cast %6 : vector<1x48x32xf32> to vector<48x32xf32>
    %c0_12 = arith.constant 0 : index
    %c0_13 = arith.constant 0 : index
    %c0_14 = arith.constant 0 : index
    %8 = vector.load %arg5[%c0_12, %c0_13, %c0_14] : memref<2x1x32xf32, #tpu.memory_space<vmem>>, vector<1x1x32xf32>
    %9 = vector.shape_cast %8 : vector<1x1x32xf32> to vector<1x32xf32>
    %cst = arith.constant dense<0.000000e+00> : vector<2x48xf32>
    %10 = tpu.matmul %0, %3, %cst {dimension_numbers = #tpu.dot_dimension_numbers<[1], [0], [0], [1], [0, 0, 1, 1], [], []>} : vector<2x32xf32>, vector<32x48xf32>, vector<2x48xf32> -> vector<2x48xf32>
    %11 = vector.broadcast %5 : vector<1x48xf32> to vector<2x48xf32>
    %12 = arith.addf %10, %11 : vector<2x48xf32>
    %cst_15 = arith.constant dense<0.000000e+00> : vector<2xf32>
    %13 = vector.multi_reduction <add>, %12, %cst_15 [1] : vector<2x48xf32> to vector<2xf32>
    %14 = vector.shape_cast %13 : vector<2xf32> to vector<2x1xf32>
    %cst_16 = arith.constant 4.800000e+01 : f32
    %15 = vector.broadcast %cst_16 : f32 to vector<2x1xf32>
    %16 = arith.divf %14, %15 : vector<2x1xf32>
    %17 = vector.broadcast %16 : vector<2x1xf32> to vector<2x48xf32>
    %18 = arith.subf %12, %17 : vector<2x48xf32>
    %19 = vector.broadcast %16 : vector<2x1xf32> to vector<2x48xf32>
    %20 = arith.subf %12, %19 : vector<2x48xf32>
    %21 = arith.mulf %18, %20 : vector<2x48xf32>
    %cst_17 = arith.constant dense<0.000000e+00> : vector<2xf32>
    %22 = vector.multi_reduction <add>, %21, %cst_17 [1] : vector<2x48xf32> to vector<2xf32>
    %23 = vector.shape_cast %22 : vector<2xf32> to vector<2x1xf32>
    %cst_18 = arith.constant 4.800000e+01 : f32
    %24 = vector.broadcast %cst_18 : f32 to vector<2x1xf32>
    %25 = arith.divf %23, %24 : vector<2x1xf32>
    %26 = vector.broadcast %16 : vector<2x1xf32> to vector<2x48xf32>
    %27 = arith.subf %12, %26 : vector<2x48xf32>
    %cst_19 = arith.constant 9.99999974E-6 : f32
    %28 = vector.broadcast %cst_19 : f32 to vector<2x1xf32>
    %29 = arith.addf %25, %28 : vector<2x1xf32>
    %30 = math.rsqrt %29 : vector<2x1xf32>
    %31 = vector.broadcast %30 : vector<2x1xf32> to vector<2x48xf32>
    %32 = arith.mulf %27, %31 : vector<2x48xf32>
    %cst_20 = arith.constant dense<0.000000e+00> : vector<2x32xf32>
    %33 = tpu.matmul %32, %7, %cst_20 {dimension_numbers = #tpu.dot_dimension_numbers<[1], [0], [0], [1], [0, 0, 1, 1], [], []>} : vector<2x48xf32>, vector<48x32xf32>, vector<2x32xf32> -> vector<2x32xf32>
    %34 = vector.broadcast %9 : vector<1x32xf32> to vector<2x32xf32>
    %35 = arith.addf %33, %34 : vector<2x32xf32>
    %36 = arith.addf %0, %35 : vector<2x32xf32>
    %c0_21 = arith.constant 0 : index
    %c0_22 = arith.constant 0 : index
    %c0_23 = arith.constant 0 : index
    %37 = vector.load %arg6[%c0_21, %c0_22, %c0_23] : memref<2x48x32xf32, #tpu.memory_space<vmem>>, vector<1x48x32xf32>
    %38 = vector.shape_cast %37 : vector<1x48x32xf32> to vector<48x32xf32>
    %c0_24 = arith.constant 0 : index
    %c0_25 = arith.constant 0 : index
    %c0_26 = arith.constant 0 : index
    %39 = vector.load %arg7[%c0_24, %c0_25, %c0_26] : memref<2x1x32xf32, #tpu.memory_space<vmem>>, vector<1x1x32xf32>
    %40 = vector.shape_cast %39 : vector<1x1x32xf32> to vector<1x32xf32>
    %c0_27 = arith.constant 0 : index
    %c0_28 = arith.constant 0 : index
    %c0_29 = arith.constant 0 : index
    %41 = vector.load %arg8[%c0_27, %c0_28, %c0_29] : memref<2x32x48xf32, #tpu.memory_space<vmem>>, vector<1x32x48xf32>
    %42 = vector.shape_cast %41 : vector<1x32x48xf32> to vector<32x48xf32>
    %c0_30 = arith.constant 0 : index
    %c0_31 = arith.constant 0 : index
    %c0_32 = arith.constant 0 : index
    %43 = vector.load %arg9[%c0_30, %c0_31, %c0_32] : memref<2x1x48xf32, #tpu.memory_space<vmem>>, vector<1x1x48xf32>
    %44 = vector.shape_cast %43 : vector<1x1x48xf32> to vector<1x48xf32>
    %cst_33 = arith.constant dense<0.000000e+00> : vector<2x32xf32>
    %45 = tpu.matmul %1, %38, %cst_33 {dimension_numbers = #tpu.dot_dimension_numbers<[1], [0], [0], [1], [0, 0, 1, 1], [], []>} : vector<2x48xf32>, vector<48x32xf32>, vector<2x32xf32> -> vector<2x32xf32>
    %46 = vector.broadcast %40 : vector<1x32xf32> to vector<2x32xf32>
    %47 = arith.addf %45, %46 : vector<2x32xf32>
    %cst_34 = arith.constant dense<0.000000e+00> : vector<2xf32>
    %48 = vector.multi_reduction <add>, %47, %cst_34 [1] : vector<2x32xf32> to vector<2xf32>
    %49 = vector.shape_cast %48 : vector<2xf32> to vector<2x1xf32>
    %cst_35 = arith.constant 3.200000e+01 : f32
    %50 = vector.broadcast %cst_35 : f32 to vector<2x1xf32>
    %51 = arith.divf %49, %50 : vector<2x1xf32>
    %52 = vector.broadcast %51 : vector<2x1xf32> to vector<2x32xf32>
    %53 = arith.subf %47, %52 : vector<2x32xf32>
    %54 = vector.broadcast %51 : vector<2x1xf32> to vector<2x32xf32>
    %55 = arith.subf %47, %54 : vector<2x32xf32>
    %56 = arith.mulf %53, %55 : vector<2x32xf32>
    %cst_36 = arith.constant dense<0.000000e+00> : vector<2xf32>
    %57 = vector.multi_reduction <add>, %56, %cst_36 [1] : vector<2x32xf32> to vector<2xf32>
    %58 = vector.shape_cast %57 : vector<2xf32> to vector<2x1xf32>
    %cst_37 = arith.constant 3.200000e+01 : f32
    %59 = vector.broadcast %cst_37 : f32 to vector<2x1xf32>
    %60 = arith.divf %58, %59 : vector<2x1xf32>
    %61 = vector.broadcast %51 : vector<2x1xf32> to vector<2x32xf32>
    %62 = arith.subf %47, %61 : vector<2x32xf32>
    %cst_38 = arith.constant 9.99999974E-6 : f32
    %63 = vector.broadcast %cst_38 : f32 to vector<2x1xf32>
    %64 = arith.addf %60, %63 : vector<2x1xf32>
    %65 = math.rsqrt %64 : vector<2x1xf32>
    %66 = vector.broadcast %65 : vector<2x1xf32> to vector<2x32xf32>
    %67 = arith.mulf %62, %66 : vector<2x32xf32>
    %cst_39 = arith.constant dense<0.000000e+00> : vector<2x48xf32>
    %68 = tpu.matmul %67, %42, %cst_39 {dimension_numbers = #tpu.dot_dimension_numbers<[1], [0], [0], [1], [0, 0, 1, 1], [], []>} : vector<2x32xf32>, vector<32x48xf32>, vector<2x48xf32> -> vector<2x48xf32>
    %69 = vector.broadcast %44 : vector<1x48xf32> to vector<2x48xf32>
    %70 = arith.addf %68, %69 : vector<2x48xf32>
    %71 = arith.addf %1, %70 : vector<2x48xf32>
    %c1 = arith.constant 1 : index
    %c0_40 = arith.constant 0 : index
    %c0_41 = arith.constant 0 : index
    %72 = vector.load %arg2[%c1, %c0_40, %c0_41] : memref<2x32x48xf32, #tpu.memory_space<vmem>>, vector<1x32x48xf32>
    %73 = vector.shape_cast %72 : vector<1x32x48xf32> to vector<32x48xf32>
    %c1_42 = arith.constant 1 : index
    %c0_43 = arith.constant 0 : index
    %c0_44 = arith.constant 0 : index
    %74 = vector.load %arg3[%c1_42, %c0_43, %c0_44] : memref<2x1x48xf32, #tpu.memory_space<vmem>>, vector<1x1x48xf32>
    %75 = vector.shape_cast %74 : vector<1x1x48xf32> to vector<1x48xf32>
    %c1_45 = arith.constant 1 : index
    %c0_46 = arith.constant 0 : index
    %c0_47 = arith.constant 0 : index
    %76 = vector.load %arg4[%c1_45, %c0_46, %c0_47] : memref<2x48x32xf32, #tpu.memory_space<vmem>>, vector<1x48x32xf32>
    %77 = vector.shape_cast %76 : vector<1x48x32xf32> to vector<48x32xf32>
    %c1_48 = arith.constant 1 : index
    %c0_49 = arith.constant 0 : index
    %c0_50 = arith.constant 0 : index
    %78 = vector.load %arg5[%c1_48, %c0_49, %c0_50] : memref<2x1x32xf32, #tpu.memory_space<vmem>>, vector<1x1x32xf32>
    %79 = vector.shape_cast %78 : vector<1x1x32xf32> to vector<1x32xf32>
    %cst_51 = arith.constant dense<0.000000e+00> : vector<2x48xf32>
    %80 = tpu.matmul %36, %73, %cst_51 {dimension_numbers = #tpu.dot_dimension_numbers<[1], [0], [0], [1], [0, 0, 1, 1], [], []>} : vector<2x32xf32>, vector<32x48xf32>, vector<2x48xf32> -> vector<2x48xf32>
    %81 = vector.broadcast %75 : vector<1x48xf32> to vector<2x48xf32>
    %82 = arith.addf %80, %81 : vector<2x48xf32>
    %cst_52 = arith.constant dense<0.000000e+00> : vector<2xf32>
    %83 = vector.multi_reduction <add>, %82, %cst_52 [1] : vector<2x48xf32> to vector<2xf32>
    %84 = vector.shape_cast %83 : vector<2xf32> to vector<2x1xf32>
    %cst_53 = arith.constant 4.800000e+01 : f32
    %85 = vector.broadcast %cst_53 : f32 to vector<2x1xf32>
    %86 = arith.divf %84, %85 : vector<2x1xf32>
    %87 = vector.broadcast %86 : vector<2x1xf32> to vector<2x48xf32>
    %88 = arith.subf %82, %87 : vector<2x48xf32>
    %89 = vector.broadcast %86 : vector<2x1xf32> to vector<2x48xf32>
    %90 = arith.subf %82, %89 : vector<2x48xf32>
    %91 = arith.mulf %88, %90 : vector<2x48xf32>
    %cst_54 = arith.constant dense<0.000000e+00> : vector<2xf32>
    %92 = vector.multi_reduction <add>, %91, %cst_54 [1] : vector<2x48xf32> to vector<2xf32>
    %93 = vector.shape_cast %92 : vector<2xf32> to vector<2x1xf32>
    %cst_55 = arith.constant 4.800000e+01 : f32
    %94 = vector.broadcast %cst_55 : f32 to vector<2x1xf32>
    %95 = arith.divf %93, %94 : vector<2x1xf32>
    %96 = vector.broadcast %86 : vector<2x1xf32> to vector<2x48xf32>
    %97 = arith.subf %82, %96 : vector<2x48xf32>
    %cst_56 = arith.constant 9.99999974E-6 : f32
    %98 = vector.broadcast %cst_56 : f32 to vector<2x1xf32>
    %99 = arith.addf %95, %98 : vector<2x1xf32>
    %100 = math.rsqrt %99 : vector<2x1xf32>
    %101 = vector.broadcast %100 : vector<2x1xf32> to vector<2x48xf32>
    %102 = arith.mulf %97, %101 : vector<2x48xf32>
    %cst_57 = arith.constant dense<0.000000e+00> : vector<2x32xf32>
    %103 = tpu.matmul %102, %77, %cst_57 {dimension_numbers = #tpu.dot_dimension_numbers<[1], [0], [0], [1], [0, 0, 1, 1], [], []>} : vector<2x48xf32>, vector<48x32xf32>, vector<2x32xf32> -> vector<2x32xf32>
    %104 = vector.broadcast %79 : vector<1x32xf32> to vector<2x32xf32>
    %105 = arith.addf %103, %104 : vector<2x32xf32>
    %106 = arith.addf %36, %105 : vector<2x32xf32>
    %c1_58 = arith.constant 1 : index
    %c0_59 = arith.constant 0 : index
    %c0_60 = arith.constant 0 : index
    %107 = vector.load %arg6[%c1_58, %c0_59, %c0_60] : memref<2x48x32xf32, #tpu.memory_space<vmem>>, vector<1x48x32xf32>
    %108 = vector.shape_cast %107 : vector<1x48x32xf32> to vector<48x32xf32>
    %c1_61 = arith.constant 1 : index
    %c0_62 = arith.constant 0 : index
    %c0_63 = arith.constant 0 : index
    %109 = vector.load %arg7[%c1_61, %c0_62, %c0_63] : memref<2x1x32xf32, #tpu.memory_space<vmem>>, vector<1x1x32xf32>
    %110 = vector.shape_cast %109 : vector<1x1x32xf32> to vector<1x32xf32>
    %c1_64 = arith.constant 1 : index
    %c0_65 = arith.constant 0 : index
    %c0_66 = arith.constant 0 : index
    %111 = vector.load %arg8[%c1_64, %c0_65, %c0_66] : memref<2x32x48xf32, #tpu.memory_space<vmem>>, vector<1x32x48xf32>
    %112 = vector.shape_cast %111 : vector<1x32x48xf32> to vector<32x48xf32>
    %c1_67 = arith.constant 1 : index
    %c0_68 = arith.constant 0 : index
    %c0_69 = arith.constant 0 : index
    %113 = vector.load %arg9[%c1_67, %c0_68, %c0_69] : memref<2x1x48xf32, #tpu.memory_space<vmem>>, vector<1x1x48xf32>
    %114 = vector.shape_cast %113 : vector<1x1x48xf32> to vector<1x48xf32>
    %cst_70 = arith.constant dense<0.000000e+00> : vector<2x32xf32>
    %115 = tpu.matmul %71, %108, %cst_70 {dimension_numbers = #tpu.dot_dimension_numbers<[1], [0], [0], [1], [0, 0, 1, 1], [], []>} : vector<2x48xf32>, vector<48x32xf32>, vector<2x32xf32> -> vector<2x32xf32>
    %116 = vector.broadcast %110 : vector<1x32xf32> to vector<2x32xf32>
    %117 = arith.addf %115, %116 : vector<2x32xf32>
    %cst_71 = arith.constant dense<0.000000e+00> : vector<2xf32>
    %118 = vector.multi_reduction <add>, %117, %cst_71 [1] : vector<2x32xf32> to vector<2xf32>
    %119 = vector.shape_cast %118 : vector<2xf32> to vector<2x1xf32>
    %cst_72 = arith.constant 3.200000e+01 : f32
    %120 = vector.broadcast %cst_72 : f32 to vector<2x1xf32>
    %121 = arith.divf %119, %120 : vector<2x1xf32>
    %122 = vector.broadcast %121 : vector<2x1xf32> to vector<2x32xf32>
    %123 = arith.subf %117, %122 : vector<2x32xf32>
    %124 = vector.broadcast %121 : vector<2x1xf32> to vector<2x32xf32>
    %125 = arith.subf %117, %124 : vector<2x32xf32>
    %126 = arith.mulf %123, %125 : vector<2x32xf32>
    %cst_73 = arith.constant dense<0.000000e+00> : vector<2xf32>
    %127 = vector.multi_reduction <add>, %126, %cst_73 [1] : vector<2x32xf32> to vector<2xf32>
    %128 = vector.shape_cast %127 : vector<2xf32> to vector<2x1xf32>
    %cst_74 = arith.constant 3.200000e+01 : f32
    %129 = vector.broadcast %cst_74 : f32 to vector<2x1xf32>
    %130 = arith.divf %128, %129 : vector<2x1xf32>
    %131 = vector.broadcast %121 : vector<2x1xf32> to vector<2x32xf32>
    %132 = arith.subf %117, %131 : vector<2x32xf32>
    %cst_75 = arith.constant 9.99999974E-6 : f32
    %133 = vector.broadcast %cst_75 : f32 to vector<2x1xf32>
    %134 = arith.addf %130, %133 : vector<2x1xf32>
    %135 = math.rsqrt %134 : vector<2x1xf32>
    %136 = vector.broadcast %135 : vector<2x1xf32> to vector<2x32xf32>
    %137 = arith.mulf %132, %136 : vector<2x32xf32>
    %cst_76 = arith.constant dense<0.000000e+00> : vector<2x48xf32>
    %138 = tpu.matmul %137, %112, %cst_76 {dimension_numbers = #tpu.dot_dimension_numbers<[1], [0], [0], [1], [0, 0, 1, 1], [], []>} : vector<2x32xf32>, vector<32x48xf32>, vector<2x48xf32> -> vector<2x48xf32>
    %139 = vector.broadcast %114 : vector<1x48xf32> to vector<2x48xf32>
    %140 = arith.addf %138, %139 : vector<2x48xf32>
    %141 = arith.addf %71, %140 : vector<2x48xf32>
    %c0_77 = arith.constant 0 : index
    %c0_78 = arith.constant 0 : index
    %142 = vector.load %arg10[%c0_77, %c0_78] : memref<2x32xf32, #tpu.memory_space<vmem>>, vector<2x32xf32>
    tpu.vector_store %arg10[%c0_77, %c0_78], %106 {strides = array<i32>} : memref<2x32xf32, #tpu.memory_space<vmem>>, vector<2x32xf32>,
    %c0_79 = arith.constant 0 : index
    %c0_80 = arith.constant 0 : index
    %143 = vector.load %arg11[%c0_79, %c0_80] : memref<2x48xf32, #tpu.memory_space<vmem>>, vector<2x48xf32>
    tpu.vector_store %arg11[%c0_79, %c0_80], %141 {strides = array<i32>} : memref<2x48xf32, #tpu.memory_space<vmem>>, vector<2x48xf32>,
    return
  }
}

</mosaic_0001>

<llo_original>
// kernel: fused_cross_transformer.1
$region0: #{fused_cross_transformer.1}
  #allocation0 [shape = 'u32[]', space=smem, size = 0x4, offset = 0x4, fixed_abs, tag = 'smem constant byte address 0x4 - core index']
  #allocation1 [shape = 'u32[144,128]{1,0:T(1,128)}', space=vmem, size = 0x12000, scoped, tag = 'internal scratch']
  %s0 = inlined_call_operand.hbm [shape: f32[2,32], index: 0, kind: input, shape index: {}, may-alias: {0,10}]
  %s1 = inlined_call_operand.hbm [shape: f32[2,48], index: 1, kind: input, shape index: {}, may-alias: {1,11}]
  %s2 = inlined_call_operand.vmem [shape: f32[2,32,48], index: 2, kind: input, shape index: {}]
  %s3 = inlined_call_operand.vmem [shape: f32[2,1,48], index: 3, kind: input, shape index: {}]
  %s4 = inlined_call_operand.vmem [shape: f32[2,48,32], index: 4, kind: input, shape index: {}]
  %s5 = inlined_call_operand.vmem [shape: f32[2,1,32], index: 5, kind: input, shape index: {}]
  %s6 = inlined_call_operand.vmem [shape: f32[2,48,32], index: 6, kind: input, shape index: {}]
  %s7 = inlined_call_operand.vmem [shape: f32[2,1,32], index: 7, kind: input, shape index: {}]
  %s8 = inlined_call_operand.vmem [shape: f32[2,32,48], index: 8, kind: input, shape index: {}]
  %s9 = inlined_call_operand.vmem [shape: f32[2,1,48], index: 9, kind: input, shape index: {}]
  %s10 = inlined_call_operand.hbm [shape: f32[2,32], index: 10, kind: output, shape index: {0}, may-alias: {0,10}]
  %s11 = inlined_call_operand.hbm [shape: f32[2,48], index: 11, kind: output, shape index: {1}, may-alias: {1,11}]
  %12 = xla_tuple %s10, %s11
  %s13 = sld [smem:[#allocation0]]
  $region66: #{fused_cross_transformer.1} parent=0
    _
  %s15 = ssub.s32 1, %s13
  %s16 = scalar_select 0, %s15, %s13
  $region1: #{fused_cross_transformer.1} parent=0
    #allocation2 [shape = 'u8[1024]{0}', space=vmem, size = 0x400, scoped, tag = 'input window, operand 0, single buffered']
    #allocation3 [shape = 's32[1]{0}', space=sflag, size = 0x4, scoped, tag = 'scoped memory for fused_cross_transformer.1']
    #allocation4 [shape = 's32[1]{0}', space=sflag, size = 0x4, scoped, tag = 'scoped memory for fused_cross_transformer.1']
    #allocation5 [shape = 'u8[1024]{0}', space=vmem, size = 0x400, scoped, tag = 'input window, operand 1, single buffered']
    #allocation6 [shape = 's32[1]{0}', space=sflag, size = 0x4, scoped, tag = 'scoped memory for fused_cross_transformer.1']
    #allocation7 [shape = 'u8[1024]{0}', space=vmem, size = 0x400, scoped, tag = 'output window, operand 0, single buffered']
    #allocation8 [shape = 'u8[1024]{0}', space=vmem, size = 0x400, scoped, tag = 'output window, operand 1, single buffered']
    #allocation9 [shape = 's32[1]{0}', space=sflag, size = 0x4, scoped, tag = 'scoped memory for fused_cross_transformer.1']
    %17 = vsyncpa [#allocation3], 0
    %18 = vsyncpa [#allocation6], 0
    %19 = vsyncpa [#allocation4], 0
    %20 = vsyncpa [#allocation9], 0
    // Predicated region
    $region2: #{fused_cross_transformer.1} parent=1 // pred_check
      _
    $region3: #{fused_cross_transformer.1} parent=1 // pred_check_branch
      %22 = sbr.rel (0) target = $region5
    $region4: #{fused_cross_transformer.1} parent=1 // pred_region
      %s24 = ssub.s32 32, 32
      %25 = vsyncadd [#allocation3], %s24
      %s27 = sshll.u32 [#allocation2], 4
      %s28 = int_to_ptr.vmem [resolvable:$true] %s27
      %30 = dma.hbm_to_vmem [thread:$0]  %s0, 32, %s28, [#allocation3]
    $region5: #{fused_cross_transformer.1} parent=1 // pred_fallthru
      _
    // Predicated region
    $region6: #{fused_cross_transformer.1} parent=1 // pred_check
      _
    $region7: #{fused_cross_transformer.1} parent=1 // pred_check_branch
      %32 = sbr.rel (0) target = $region9
    $region8: #{fused_cross_transformer.1} parent=1 // pred_region
      %s34 = ssub.s32 32, 32
      %35 = vsyncadd [#allocation6], %s34
      %s37 = sshll.u32 [#allocation5], 4
      %s38 = int_to_ptr.vmem [resolvable:$true] %s37
      %40 = dma.hbm_to_vmem [thread:$0]  %s1, 32, %s38, [#allocation6]
    $region9: #{fused_cross_transformer.1} parent=1 // pred_fallthru
      _
    // Predicated region
    $region10: #{fused_cross_transformer.1} parent=1 // pred_check
      _
    $region11: #{fused_cross_transformer.1} parent=1 // pred_check_branch
      %42 = sbr.rel (0) target = $region13
    $region12: #{fused_cross_transformer.1} parent=1 // pred_region
      _
    $region13: #{fused_cross_transformer.1} parent=1 // pred_fallthru
      _
    // Predicated region
    $region14: #{fused_cross_transformer.1} parent=1 // pred_check
      _
    $region15: #{fused_cross_transformer.1} parent=1 // pred_check_branch
      %44 = sbr.rel (0) target = $region17
    $region16: #{fused_cross_transformer.1} parent=1 // pred_region
      _
    $region17: #{fused_cross_transformer.1} parent=1 // pred_fallthru
      _
    // Predicated region
    $region18: #{fused_cross_transformer.1} parent=1 // pred_check
      _
    $region19: #{fused_cross_transformer.1} parent=1 // pred_check_branch
      %46 = sbr.rel (0) target = $region21
    $region20: #{fused_cross_transformer.1} parent=1 // pred_region
      _
    $region21: #{fused_cross_transformer.1} parent=1 // pred_fallthru
      _
    // Predicated region
    $region22: #{fused_cross_transformer.1} parent=1 // pred_check
      _
    $region23: #{fused_cross_transformer.1} parent=1 // pred_check_branch
      %48 = sbr.rel (0) target = $region25
    $region24: #{fused_cross_transformer.1} parent=1 // pred_region
      _
    $region25: #{fused_cross_transformer.1} parent=1 // pred_fallthru
      _
    // Predicated region
    $region26: #{fused_cross_transformer.1} parent=1 // pred_check
      _
    $region27: #{fused_cross_transformer.1} parent=1 // pred_check_branch
      %50 = sbr.rel (0) target = $region29
    $region28: #{fused_cross_transformer.1} parent=1 // pred_region
      _
    $region29: #{fused_cross_transformer.1} parent=1 // pred_fallthru
      _
    // Predicated region
    $region30: #{fused_cross_transformer.1} parent=1 // pred_check
      _
    $region31: #{fused_cross_transformer.1} parent=1 // pred_check_branch
      %52 = sbr.rel (0) target = $region33
    $region32: #{fused_cross_transformer.1} parent=1 // pred_region
      _
    $region33: #{fused_cross_transformer.1} parent=1 // pred_fallthru
      _
    // Predicated region
    $region34: #{fused_cross_transformer.1} parent=1 // pred_check
      _
    $region35: #{fused_cross_transformer.1} parent=1 // pred_check_branch
      %54 = sbr.rel (0) target = $region37
    $region36: #{fused_cross_transformer.1} parent=1 // pred_region
      _
    $region37: #{fused_cross_transformer.1} parent=1 // pred_fallthru
      _
    // Predicated region
    $region38: #{fused_cross_transformer.1} parent=1 // pred_check
      _
    $region39: #{fused_cross_transformer.1} parent=1 // pred_check_branch
      %56 = sbr.rel (0) target = $region41
    $region40: #{fused_cross_transformer.1} parent=1 // pred_region
      _
    $region41: #{fused_cross_transformer.1} parent=1 // pred_fallthru
      _
    // Predicated region
    $region42: #{fused_cross_transformer.1} parent=1 // pred_check
      _
    $region43: #{fused_cross_transformer.1} parent=1 // pred_check_branch
      %58 = sbr.rel (0) target = $region45
    $region44: #{fused_cross_transformer.1} parent=1 // pred_region
      %59 = dma.done [#allocation3], 32
    $region45: #{fused_cross_transformer.1} parent=1 // pred_fallthru
      _
    // Predicated region
    $region46: #{fused_cross_transformer.1} parent=1 // pred_check
      _
    $region47: #{fused_cross_transformer.1} parent=1 // pred_check_branch
      %61 = sbr.rel (0) target = $region49
    $region48: #{fused_cross_transformer.1} parent=1 // pred_region
      %62 = dma.done [#allocation6], 32
    $region49: #{fused_cross_transformer.1} parent=1 // pred_fallthru
      _
    %v63 = vld [vmem:[#allocation2] sm:$0x3]
    %v64 = vld [vmem:[#allocation5] sm:$0x3]
    %v65 = vld [vmem:[%s2] sm:$0xff]
    %v66 = vld [vmem:[%s2 + $0x8] sm:$0xff]
    %v67 = vld [vmem:[%s2 + $0x10] sm:$0xff]
    %v68 = vld [vmem:[%s2 + $0x18] sm:$0xff]
    %v69 = vld [vmem:[%s3] sm:$0x1]
    %v70 = vld [vmem:[%s4] sm:$0xff]
    %v71 = vld [vmem:[%s4 + $0x8] sm:$0xff]
    %v72 = vld [vmem:[%s4 + $0x10] sm:$0xff]
    %v73 = vld [vmem:[%s4 + $0x18] sm:$0xff]
    %v74 = vld [vmem:[%s4 + $0x20] sm:$0xff]
    %v75 = vld [vmem:[%s4 + $0x28] sm:$0xff]
    %v76 = vld [vmem:[%s5] sm:$0x1]
    %v78 = vlaneseq
    %v79 = vshrl.u32 %v78, 7
    %v80 = vsub.s32 0, %v79
    %v81 = vrot.slane %v69, %v80
    %vm83 = vcmask 261120
    %v85 = vsel %vm83, %v63, 0
    %87 = vmatprep.subr.mxu0 0.0
    %88 = vmatpush1.msra.mxu0 0.0
    %89 = vmatprep.subr.mxu0 0.0
    %90 = vmatpush1.msra.mxu0 0.0
    %91 = vmatprep.subr.mxu0 0.0
    %92 = vmatpush1.msra.mxu0 0.0
    %93 = vmatprep.subr.mxu0 0.0
    %94 = vmatpush1.msra.mxu0 0.0
    %95 = vmatprep.subr.mxu0 0.0
    %96 = vmatpush1.msra.mxu0 0.0
    %97 = vmatprep.subr.mxu0 0.0
    %98 = vmatpush1.msra.mxu0 0.0
    %99 = vmatprep.subr.mxu0 0.0
    %100 = vmatpush1.msra.mxu0 0.0
    %101 = vmatprep.subr.mxu0 0.0
    %102 = vmatpush1.msra.mxu0 0.0
    %103 = vmatprep.subr.mxu0 0.0
    %104 = vmatpush1.msra.mxu0 0.0
    %105 = vmatprep.subr.mxu0 0.0
    %106 = vmatpush1.msra.mxu0 0.0
    %107 = vmatprep.subr.mxu0 0.0
    %108 = vmatpush1.msra.mxu0 0.0
    %109 = vmatprep.subr.mxu0 0.0
    %110 = vmatpush1.msra.mxu0 0.0
    %111 = vmatprep.subr.mxu0 0.0
    %112 = vmatpush1.msra.mxu0 %v68
    %113 = vmatprep.subr.mxu0 0.0
    %114 = vmatpush1.msra.mxu0 %v67
    %115 = vmatprep.subr.mxu0 0.0
    %116 = vmatpush1.msra.mxu0 %v66
    %117 = vmatprep.subr.mxu0 0.0
    %118 = vmatpush1.msra.mxu0 %v65
    %119 = vmatprep.subr.mxu0 0.0
    %120 = vmatpush2.msra.mxu0 0.0
    %121 = vmatprep.subr.mxu0 0.0
    %122 = vmatpush2.msra.mxu0 0.0
    %123 = vmatprep.subr.mxu0 0.0
    %124 = vmatpush2.msra.mxu0 0.0
    %125 = vmatprep.subr.mxu0 0.0
    %126 = vmatpush2.msra.mxu0 0.0
    %127 = vmatprep.subr.mxu0 0.0
    %128 = vmatpush2.msra.mxu0 0.0
    %129 = vmatprep.subr.mxu0 0.0
    %130 = vmatpush2.msra.mxu0 0.0
    %131 = vmatprep.subr.mxu0 0.0
    %132 = vmatpush2.msra.mxu0 0.0
    %133 = vmatprep.subr.mxu0 0.0
    %134 = vmatpush2.msra.mxu0 0.0
    %135 = vmatprep.subr.mxu0 0.0
    %136 = vmatpush2.msra.mxu0 0.0
    %137 = vmatprep.subr.mxu0 0.0
    %138 = vmatpush2.msra.mxu0 0.0
    %139 = vmatprep.subr.mxu0 0.0
    %140 = vmatpush2.msra.mxu0 0.0
    %141 = vmatprep.subr.mxu0 0.0
    %142 = vmatpush2.msra.mxu0 0.0
    %143 = vmatprep.subr.mxu0 0.0
    %144 = vmatpush2.msra.mxu0 0.0
    %145 = vmatprep.subr.mxu0 0.0
    %146 = vmatpush2.msra.mxu0 0.0
    %147 = vmatprep.subr.mxu0 0.0
    %148 = vmatpush2.msra.mxu0 0.0
    %149 = vmatprep.subr.mxu0 0.0
    %150 = vmatpush2.msra.mxu0 0.0
    %151 = vmatprep.mubr.f32.mxu0 0.0
    %152 = vmatmul.mubr.f32.gmra.mxu0 %v85
    %v153 = vpop.f32.mrf.mxu0
    %v154 = vadd.f32 %v81, %v153
    %v155 = vpop.f32.mrf.mxu0
    %156 = vdwg.mxu0
    %vm157 = vcmask 386048
    %v158 = vsel %vm157, %v154, 0.0
    %159 = vadd.xlane.f32.xlu0 %v158
    %v160 = vpop.xlane.xlu0 %159
    %v161 = vrcp.pop 48.0
    %v162 = vmul.f32 %v160, %v161
    %v163 = vsub.f32 %v154, %v162
    %v164 = vmul.f32 %v163, %v163
    %v165 = vsel %vm157, %v164, 0.0
    %166 = vadd.xlane.f32.xlu0 %v165
    %v167 = vpop.xlane.xlu0 %166
    %v168 = vmul.f32 %v167, %v161
    %v169 = vadd.f32 %v168, 1e-05
    %v170 = vrsqrt.pop %v169
    %v171 = vmul.f32 %v163, %v170
    %v173 = vlaneseq
    %v174 = vshrl.u32 %v173, 7
    %v175 = vsub.s32 0, %v174
    %v176 = vrot.slane %v76, %v175
    %vm178 = vcmask 392192
    %v180 = vsel %vm178, %v171, 0
    %182 = vmatprep.subr.mxu0 0.0
    %183 = vmatpush1.msra.mxu0 0.0
    %184 = vmatprep.subr.mxu0 0.0
    %185 = vmatpush1.msra.mxu0 0.0
    %186 = vmatprep.subr.mxu0 0.0
    %187 = vmatpush1.msra.mxu0 0.0
    %188 = vmatprep.subr.mxu0 0.0
    %189 = vmatpush1.msra.mxu0 0.0
    %190 = vmatprep.subr.mxu0 0.0
    %191 = vmatpush1.msra.mxu0 0.0
    %192 = vmatprep.subr.mxu0 0.0
    %193 = vmatpush1.msra.mxu0 0.0
    %194 = vmatprep.subr.mxu0 0.0
    %195 = vmatpush1.msra.mxu0 0.0
    %196 = vmatprep.subr.mxu0 0.0
    %197 = vmatpush1.msra.mxu0 0.0
    %198 = vmatprep.subr.mxu0 0.0
    %199 = vmatpush1.msra.mxu0 0.0
    %200 = vmatprep.subr.mxu0 0.0
    %201 = vmatpush1.msra.mxu0 0.0
    %202 = vmatprep.subr.mxu0 0.0
    %203 = vmatpush1.msra.mxu0 %v75
    %204 = vmatprep.subr.mxu0 0.0
    %205 = vmatpush1.msra.mxu0 %v74
    %206 = vmatprep.subr.mxu0 0.0
    %207 = vmatpush1.msra.mxu0 %v73
    %208 = vmatprep.subr.mxu0 0.0
    %209 = vmatpush1.msra.mxu0 %v72
    %210 = vmatprep.subr.mxu0 0.0
    %211 = vmatpush1.msra.mxu0 %v71
    %212 = vmatprep.subr.mxu0 0.0
    %213 = vmatpush1.msra.mxu0 %v70
    %214 = vmatprep.subr.mxu0 0.0
    %215 = vmatpush2.msra.mxu0 0.0
    %216 = vmatprep.subr.mxu0 0.0
    %217 = vmatpush2.msra.mxu0 0.0
    %218 = vmatprep.subr.mxu0 0.0
    %219 = vmatpush2.msra.mxu0 0.0
    %220 = vmatprep.subr.mxu0 0.0
    %221 = vmatpush2.msra.mxu0 0.0
    %222 = vmatprep.subr.mxu0 0.0
    %223 = vmatpush2.msra.mxu0 0.0
    %224 = vmatprep.subr.mxu0 0.0
    %225 = vmatpush2.msra.mxu0 0.0
    %226 = vmatprep.subr.mxu0 0.0
    %227 = vmatpush2.msra.mxu0 0.0
    %228 = vmatprep.subr.mxu0 0.0
    %229 = vmatpush2.msra.mxu0 0.0
    %230 = vmatprep.subr.mxu0 0.0
    %231 = vmatpush2.msra.mxu0 0.0
    %232 = vmatprep.subr.mxu0 0.0
    %233 = vmatpush2.msra.mxu0 0.0
    %234 = vmatprep.subr.mxu0 0.0
    %235 = vmatpush2.msra.mxu0 0.0
    %236 = vmatprep.subr.mxu0 0.0
    %237 = vmatpush2.msra.mxu0 0.0
    %238 = vmatprep.subr.mxu0 0.0
    %239 = vmatpush2.msra.mxu0 0.0
    %240 = vmatprep.subr.mxu0 0.0
    %241 = vmatpush2.msra.mxu0 0.0
    %242 = vmatprep.subr.mxu0 0.0
    %243 = vmatpush2.msra.mxu0 0.0
    %244 = vmatprep.subr.mxu0 0.0
    %245 = vmatpush2.msra.mxu0 0.0
    %246 = vmatprep.mubr.f32.mxu0 0.0
    %247 = vmatmul.mubr.f32.gmra.mxu0 %v180
    %v248 = vpop.f32.mrf.mxu0
    %v249 = vadd.f32 %v176, %v248
    %v250 = vpop.f32.mrf.mxu0
    %251 = vdwg.mxu0
    %v252 = vadd.f32 %v63, %v249
    %v253 = vld [vmem:[%s6] sm:$0xff]
    %v254 = vld [vmem:[%s6 + $0x8] sm:$0xff]
    %v255 = vld [vmem:[%s6 + $0x10] sm:$0xff]
    %v256 = vld [vmem:[%s6 + $0x18] sm:$0xff]
    %v257 = vld [vmem:[%s6 + $0x20] sm:$0xff]
    %v258 = vld [vmem:[%s6 + $0x28] sm:$0xff]
    %v259 = vld [vmem:[%s7] sm:$0x1]
    %v260 = vld [vmem:[%s8] sm:$0xff]
    %v261 = vld [vmem:[%s8 + $0x8] sm:$0xff]
    %v262 = vld [vmem:[%s8 + $0x10] sm:$0xff]
    %v263 = vld [vmem:[%s8 + $0x18] sm:$0xff]
    %v264 = vld [vmem:[%s9] sm:$0x1]
    %v266 = vlaneseq
    %v267 = vshrl.u32 %v266, 7
    %v268 = vsub.s32 0, %v267
    %v269 = vrot.slane %v259, %v268
    %v272 = vsel %vm178, %v64, 0
    %274 = vmatprep.subr.mxu0 0.0
    %275 = vmatpush1.msra.mxu0 0.0
    %276 = vmatprep.subr.mxu0 0.0
    %277 = vmatpush1.msra.mxu0 0.0
    %278 = vmatprep.subr.mxu0 0.0
    %279 = vmatpush1.msra.mxu0 0.0
    %280 = vmatprep.subr.mxu0 0.0
    %281 = vmatpush1.msra.mxu0 0.0
    %282 = vmatprep.subr.mxu0 0.0
    %283 = vmatpush1.msra.mxu0 0.0
    %284 = vmatprep.subr.mxu0 0.0
    %285 = vmatpush1.msra.mxu0 0.0
    %286 = vmatprep.subr.mxu0 0.0
    %287 = vmatpush1.msra.mxu0 0.0
    %288 = vmatprep.subr.mxu0 0.0
    %289 = vmatpush1.msra.mxu0 0.0
    %290 = vmatprep.subr.mxu0 0.0
    %291 = vmatpush1.msra.mxu0 0.0
    %292 = vmatprep.subr.mxu0 0.0
    %293 = vmatpush1.msra.mxu0 0.0
    %294 = vmatprep.subr.mxu0 0.0
    %295 = vmatpush1.msra.mxu0 %v258
    %296 = vmatprep.subr.mxu0 0.0
    %297 = vmatpush1.msra.mxu0 %v257
    %298 = vmatprep.subr.mxu0 0.0
    %299 = vmatpush1.msra.mxu0 %v256
    %300 = vmatprep.subr.mxu0 0.0
    %301 = vmatpush1.msra.mxu0 %v255
    %302 = vmatprep.subr.mxu0 0.0
    %303 = vmatpush1.msra.mxu0 %v254
    %304 = vmatprep.subr.mxu0 0.0
    %305 = vmatpush1.msra.mxu0 %v253
    %306 = vmatprep.subr.mxu0 0.0
    %307 = vmatpush2.msra.mxu0 0.0
    %308 = vmatprep.subr.mxu0 0.0
    %309 = vmatpush2.msra.mxu0 0.0
    %310 = vmatprep.subr.mxu0 0.0
    %311 = vmatpush2.msra.mxu0 0.0
    %312 = vmatprep.subr.mxu0 0.0
    %313 = vmatpush2.msra.mxu0 0.0
    %314 = vmatprep.subr.mxu0 0.0
    %315 = vmatpush2.msra.mxu0 0.0
    %316 = vmatprep.subr.mxu0 0.0
    %317 = vmatpush2.msra.mxu0 0.0
    %318 = vmatprep.subr.mxu0 0.0
    %319 = vmatpush2.msra.mxu0 0.0
    %320 = vmatprep.subr.mxu0 0.0
    %321 = vmatpush2.msra.mxu0 0.0
    %322 = vmatprep.subr.mxu0 0.0
    %323 = vmatpush2.msra.mxu0 0.0
    %324 = vmatprep.subr.mxu0 0.0
    %325 = vmatpush2.msra.mxu0 0.0
    %326 = vmatprep.subr.mxu0 0.0
    %327 = vmatpush2.msra.mxu0 0.0
    %328 = vmatprep.subr.mxu0 0.0
    %329 = vmatpush2.msra.mxu0 0.0
    %330 = vmatprep.subr.mxu0 0.0
    %331 = vmatpush2.msra.mxu0 0.0
    %332 = vmatprep.subr.mxu0 0.0
    %333 = vmatpush2.msra.mxu0 0.0
    %334 = vmatprep.subr.mxu0 0.0
    %335 = vmatpush2.msra.mxu0 0.0
    %336 = vmatprep.subr.mxu0 0.0
    %337 = vmatpush2.msra.mxu0 0.0
    %338 = vmatprep.mubr.f32.mxu0 0.0
    %339 = vmatmul.mubr.f32.gmra.mxu0 %v272
    %v340 = vpop.f32.mrf.mxu0
    %v341 = vadd.f32 %v269, %v340
    %v342 = vpop.f32.mrf.mxu0
    %343 = vdwg.mxu0
    %vm344 = vcmask 254976
    %v345 = vsel %vm344, %v341, 0.0
    %346 = vadd.xlane.f32.xlu0 %v345
    %v347 = vpop.xlane.xlu0 %346
    %v348 = vrcp.pop 32.0
    %v349 = vmul.f32 %v347, %v348
    %v350 = vsub.f32 %v341, %v349
    %v351 = vmul.f32 %v350, %v350
    %v352 = vsel %vm344, %v351, 0.0
    %353 = vadd.xlane.f32.xlu0 %v352
    %v354 = vpop.xlane.xlu0 %353
    %v355 = vmul.f32 %v354, %v348
    %v356 = vadd.f32 %v355, 1e-05
    %v357 = vrsqrt.pop %v356
    %v358 = vmul.f32 %v350, %v357
    %v360 = vlaneseq
    %v361 = vshrl.u32 %v360, 7
    %v362 = vsub.s32 0, %v361
    %v363 = vrot.slane %v264, %v362
    %v366 = vsel %vm83, %v358, 0
    %368 = vmatprep.subr.mxu0 0.0
    %369 = vmatpush1.msra.mxu0 0.0
    %370 = vmatprep.subr.mxu0 0.0
    %371 = vmatpush1.msra.mxu0 0.0
    %372 = vmatprep.subr.mxu0 0.0
    %373 = vmatpush1.msra.mxu0 0.0
    %374 = vmatprep.subr.mxu0 0.0
    %375 = vmatpush1.msra.mxu0 0.0
    %376 = vmatprep.subr.mxu0 0.0
    %377 = vmatpush1.msra.mxu0 0.0
    %378 = vmatprep.subr.mxu0 0.0
    %379 = vmatpush1.msra.mxu0 0.0
    %380 = vmatprep.subr.mxu0 0.0
    %381 = vmatpush1.msra.mxu0 0.0
    %382 = vmatprep.subr.mxu0 0.0
    %383 = vmatpush1.msra.mxu0 0.0
    %384 = vmatprep.subr.mxu0 0.0
    %385 = vmatpush1.msra.mxu0 0.0
    %386 = vmatprep.subr.mxu0 0.0
    %387 = vmatpush1.msra.mxu0 0.0
    %388 = vmatprep.subr.mxu0 0.0
    %389 = vmatpush1.msra.mxu0 0.0
    %390 = vmatprep.subr.mxu0 0.0
    %391 = vmatpush1.msra.mxu0 0.0
    %392 = vmatprep.subr.mxu0 0.0
    %393 = vmatpush1.msra.mxu0 %v263
    %394 = vmatprep.subr.mxu0 0.0
    %395 = vmatpush1.msra.mxu0 %v262
    %396 = vmatprep.subr.mxu0 0.0
    %397 = vmatpush1.msra.mxu0 %v261
    %398 = vmatprep.subr.mxu0 0.0
    %399 = vmatpush1.msra.mxu0 %v260
    %400 = vmatprep.subr.mxu0 0.0
    %401 = vmatpush2.msra.mxu0 0.0
    %402 = vmatprep.subr.mxu0 0.0
    %403 = vmatpush2.msra.mxu0 0.0
    %404 = vmatprep.subr.mxu0 0.0
    %405 = vmatpush2.msra.mxu0 0.0
    %406 = vmatprep.subr.mxu0 0.0
    %407 = vmatpush2.msra.mxu0 0.0
    %408 = vmatprep.subr.mxu0 0.0
    %409 = vmatpush2.msra.mxu0 0.0
    %410 = vmatprep.subr.mxu0 0.0
    %411 = vmatpush2.msra.mxu0 0.0
    %412 = vmatprep.subr.mxu0 0.0
    %413 = vmatpush2.msra.mxu0 0.0
    %414 = vmatprep.subr.mxu0 0.0
    %415 = vmatpush2.msra.mxu0 0.0
    %416 = vmatprep.subr.mxu0 0.0
    %417 = vmatpush2.msra.mxu0 0.0
    %418 = vmatprep.subr.mxu0 0.0
    %419 = vmatpush2.msra.mxu0 0.0
    %420 = vmatprep.subr.mxu0 0.0
    %421 = vmatpush2.msra.mxu0 0.0
    %422 = vmatprep.subr.mxu0 0.0
    %423 = vmatpush2.msra.mxu0 0.0
    %424 = vmatprep.subr.mxu0 0.0
    %425 = vmatpush2.msra.mxu0 0.0
    %426 = vmatprep.subr.mxu0 0.0
    %427 = vmatpush2.msra.mxu0 0.0
    %428 = vmatprep.subr.mxu0 0.0
    %429 = vmatpush2.msra.mxu0 0.0
    %430 = vmatprep.subr.mxu0 0.0
    %431 = vmatpush2.msra.mxu0 0.0
    %432 = vmatprep.mubr.f32.mxu0 0.0
    %433 = vmatmul.mubr.f32.gmra.mxu0 %v366
    %v434 = vpop.f32.mrf.mxu0
    %v435 = vadd.f32 %v363, %v434
    %v436 = vpop.f32.mrf.mxu0
    %437 = vdwg.mxu0
    %v438 = vadd.f32 %v64, %v435
    %s439 = scalar_lea.vmem %s2, 32
    %v440 = vld [vmem:[%s439] sm:$0xff]
    %v441 = vld [vmem:[%s439 + $0x8] sm:$0xff]
    %v442 = vld [vmem:[%s439 + $0x10] sm:$0xff]
    %v443 = vld [vmem:[%s439 + $0x18] sm:$0xff]
    %s444 = scalar_lea.vmem %s3, 1
    %v445 = vld [vmem:[%s444] sm:$0x1]
    %s446 = scalar_lea.vmem %s4, 48
    %v447 = vld [vmem:[%s446] sm:$0xff]
    %v448 = vld [vmem:[%s446 + $0x8] sm:$0xff]
    %v449 = vld [vmem:[%s446 + $0x10] sm:$0xff]
    %v450 = vld [vmem:[%s446 + $0x18] sm:$0xff]
    %v451 = vld [vmem:[%s446 + $0x20] sm:$0xff]
    %v452 = vld [vmem:[%s446 + $0x28] sm:$0xff]
    %s453 = scalar_lea.vmem %s5, 1
    %v454 = vld [vmem:[%s453] sm:$0x1]
    %v456 = vlaneseq
    %v457 = vshrl.u32 %v456, 7
    %v458 = vsub.s32 0, %v457
    %v459 = vrot.slane %v445, %v458
    %v462 = vsel %vm83, %v252, 0
    %464 = vmatprep.subr.mxu0 0.0
    %465 = vmatpush1.msra.mxu0 0.0
    %466 = vmatprep.subr.mxu0 0.0
    %467 = vmatpush1.msra.mxu0 0.0
    %468 = vmatprep.subr.mxu0 0.0
    %469 = vmatpush1.msra.mxu0 0.0
    %470 = vmatprep.subr.mxu0 0.0
    %471 = vmatpush1.msra.mxu0 0.0
    %472 = vmatprep.subr.mxu0 0.0
    %473 = vmatpush1.msra.mxu0 0.0
    %474 = vmatprep.subr.mxu0 0.0
    %475 = vmatpush1.msra.mxu0 0.0
    %476 = vmatprep.subr.mxu0 0.0
    %477 = vmatpush1.msra.mxu0 0.0
    %478 = vmatprep.subr.mxu0 0.0
    %479 = vmatpush1.msra.mxu0 0.0
    %480 = vmatprep.subr.mxu0 0.0
    %481 = vmatpush1.msra.mxu0 0.0
    %482 = vmatprep.subr.mxu0 0.0
    %483 = vmatpush1.msra.mxu0 0.0
    %484 = vmatprep.subr.mxu0 0.0
    %485 = vmatpush1.msra.mxu0 0.0
    %486 = vmatprep.subr.mxu0 0.0
    %487 = vmatpush1.msra.mxu0 0.0
    %488 = vmatprep.subr.mxu0 0.0
    %489 = vmatpush1.msra.mxu0 %v443
    %490 = vmatprep.subr.mxu0 0.0
    %491 = vmatpush1.msra.mxu0 %v442
    %492 = vmatprep.subr.mxu0 0.0
    %493 = vmatpush1.msra.mxu0 %v441
    %494 = vmatprep.subr.mxu0 0.0
    %495 = vmatpush1.msra.mxu0 %v440
    %496 = vmatprep.subr.mxu0 0.0
    %497 = vmatpush2.msra.mxu0 0.0
    %498 = vmatprep.subr.mxu0 0.0
    %499 = vmatpush2.msra.mxu0 0.0
    %500 = vmatprep.subr.mxu0 0.0
    %501 = vmatpush2.msra.mxu0 0.0
    %502 = vmatprep.subr.mxu0 0.0
    %503 = vmatpush2.msra.mxu0 0.0
    %504 = vmatprep.subr.mxu0 0.0
    %505 = vmatpush2.msra.mxu0 0.0
    %506 = vmatprep.subr.mxu0 0.0
    %507 = vmatpush2.msra.mxu0 0.0
    %508 = vmatprep.subr.mxu0 0.0
    %509 = vmatpush2.msra.mxu0 0.0
    %510 = vmatprep.subr.mxu0 0.0
    %511 = vmatpush2.msra.mxu0 0.0
    %512 = vmatprep.subr.mxu0 0.0
    %513 = vmatpush2.msra.mxu0 0.0
    %514 = vmatprep.subr.mxu0 0.0
    %515 = vmatpush2.msra.mxu0 0.0
    %516 = vmatprep.subr.mxu0 0.0
    %517 = vmatpush2.msra.mxu0 0.0
    %518 = vmatprep.subr.mxu0 0.0
    %519 = vmatpush2.msra.mxu0 0.0
    %520 = vmatprep.subr.mxu0 0.0
    %521 = vmatpush2.msra.mxu0 0.0
    %522 = vmatprep.subr.mxu0 0.0
    %523 = vmatpush2.msra.mxu0 0.0
    %524 = vmatprep.subr.mxu0 0.0
    %525 = vmatpush2.msra.mxu0 0.0
    %526 = vmatprep.subr.mxu0 0.0
    %527 = vmatpush2.msra.mxu0 0.0
    %528 = vmatprep.mubr.f32.mxu0 0.0
    %529 = vmatmul.mubr.f32.gmra.mxu0 %v462
    %v530 = vpop.f32.mrf.mxu0
    %v531 = vadd.f32 %v459, %v530
    %v532 = vpop.f32.mrf.mxu0
    %533 = vdwg.mxu0
    %v534 = vsel %vm157, %v531, 0.0
    %535 = vadd.xlane.f32.xlu0 %v534
    %v536 = vpop.xlane.xlu0 %535
    %v537 = vmul.f32 %v536, %v161
    %v538 = vsub.f32 %v531, %v537
    %v539 = vmul.f32 %v538, %v538
    %v540 = vsel %vm157, %v539, 0.0
    %541 = vadd.xlane.f32.xlu0 %v540
    %v542 = vpop.xlane.xlu0 %541
    %v543 = vmul.f32 %v542, %v161
    %v544 = vadd.f32 %v543, 1e-05
    %v545 = vrsqrt.pop %v544
    %v546 = vmul.f32 %v538, %v545
    %v548 = vlaneseq
    %v549 = vshrl.u32 %v548, 7
    %v550 = vsub.s32 0, %v549
    %v551 = vrot.slane %v454, %v550
    %v554 = vsel %vm178, %v546, 0
    %556 = vmatprep.subr.mxu0 0.0
    %557 = vmatpush1.msra.mxu0 0.0
    %558 = vmatprep.subr.mxu0 0.0
    %559 = vmatpush1.msra.mxu0 0.0
    %560 = vmatprep.subr.mxu0 0.0
    %561 = vmatpush1.msra.mxu0 0.0
    %562 = vmatprep.subr.mxu0 0.0
    %563 = vmatpush1.msra.mxu0 0.0
    %564 = vmatprep.subr.mxu0 0.0
    %565 = vmatpush1.msra.mxu0 0.0
    %566 = vmatprep.subr.mxu0 0.0
    %567 = vmatpush1.msra.mxu0 0.0
    %568 = vmatprep.subr.mxu0 0.0
    %569 = vmatpush1.msra.mxu0 0.0
    %570 = vmatprep.subr.mxu0 0.0
    %571 = vmatpush1.msra.mxu0 0.0
    %572 = vmatprep.subr.mxu0 0.0
    %573 = vmatpush1.msra.mxu0 0.0
    %574 = vmatprep.subr.mxu0 0.0
    %575 = vmatpush1.msra.mxu0 0.0
    %576 = vmatprep.subr.mxu0 0.0
    %577 = vmatpush1.msra.mxu0 %v452
    %578 = vmatprep.subr.mxu0 0.0
    %579 = vmatpush1.msra.mxu0 %v451
    %580 = vmatprep.subr.mxu0 0.0
    %581 = vmatpush1.msra.mxu0 %v450
    %582 = vmatprep.subr.mxu0 0.0
    %583 = vmatpush1.msra.mxu0 %v449
    %584 = vmatprep.subr.mxu0 0.0
    %585 = vmatpush1.msra.mxu0 %v448
    %586 = vmatprep.subr.mxu0 0.0
    %587 = vmatpush1.msra.mxu0 %v447
    %588 = vmatprep.subr.mxu0 0.0
    %589 = vmatpush2.msra.mxu0 0.0
    %590 = vmatprep.subr.mxu0 0.0
    %591 = vmatpush2.msra.mxu0 0.0
    %592 = vmatprep.subr.mxu0 0.0
    %593 = vmatpush2.msra.mxu0 0.0
    %594 = vmatprep.subr.mxu0 0.0
    %595 = vmatpush2.msra.mxu0 0.0
    %596 = vmatprep.subr.mxu0 0.0
    %597 = vmatpush2.msra.mxu0 0.0
    %598 = vmatprep.subr.mxu0 0.0
    %599 = vmatpush2.msra.mxu0 0.0
    %600 = vmatprep.subr.mxu0 0.0
    %601 = vmatpush2.msra.mxu0 0.0
    %602 = vmatprep.subr.mxu0 0.0
    %603 = vmatpush2.msra.mxu0 0.0
    %604 = vmatprep.subr.mxu0 0.0
    %605 = vmatpush2.msra.mxu0 0.0
    %606 = vmatprep.subr.mxu0 0.0
    %607 = vmatpush2.msra.mxu0 0.0
    %608 = vmatprep.subr.mxu0 0.0
    %609 = vmatpush2.msra.mxu0 0.0
    %610 = vmatprep.subr.mxu0 0.0
    %611 = vmatpush2.msra.mxu0 0.0
    %612 = vmatprep.subr.mxu0 0.0
    %613 = vmatpush2.msra.mxu0 0.0
    %614 = vmatprep.subr.mxu0 0.0
    %615 = vmatpush2.msra.mxu0 0.0
    %616 = vmatprep.subr.mxu0 0.0
    %617 = vmatpush2.msra.mxu0 0.0
    %618 = vmatprep.subr.mxu0 0.0
    %619 = vmatpush2.msra.mxu0 0.0
    %620 = vmatprep.mubr.f32.mxu0 0.0
    %621 = vmatmul.mubr.f32.gmra.mxu0 %v554
    %v622 = vpop.f32.mrf.mxu0
    %v623 = vadd.f32 %v551, %v622
    %v624 = vpop.f32.mrf.mxu0
    %625 = vdwg.mxu0
    %v626 = vadd.f32 %v252, %v623
    %s627 = scalar_lea.vmem %s6, 48
    %v628 = vld [vmem:[%s627] sm:$0xff]
    %v629 = vld [vmem:[%s627 + $0x8] sm:$0xff]
    %v630 = vld [vmem:[%s627 + $0x10] sm:$0xff]
    %v631 = vld [vmem:[%s627 + $0x18] sm:$0xff]
    %v632 = vld [vmem:[%s627 + $0x20] sm:$0xff]
    %v633 = vld [vmem:[%s627 + $0x28] sm:$0xff]
    %s634 = scalar_lea.vmem %s7, 1
    %v635 = vld [vmem:[%s634] sm:$0x1]
    %s636 = scalar_lea.vmem %s8, 32
    %v637 = vld [vmem:[%s636] sm:$0xff]
    %v638 = vld [vmem:[%s636 + $0x8] sm:$0xff]
    %v639 = vld [vmem:[%s636 + $0x10] sm:$0xff]
    %v640 = vld [vmem:[%s636 + $0x18] sm:$0xff]
    %s641 = scalar_lea.vmem %s9, 1
    %v642 = vld [vmem:[%s641] sm:$0x1]
    %v644 = vlaneseq
    %v645 = vshrl.u32 %v644, 7
    %v646 = vsub.s32 0, %v645
    %v647 = vrot.slane %v635, %v646
    %v650 = vsel %vm178, %v438, 0
    %652 = vmatprep.subr.mxu0 0.0
    %653 = vmatpush1.msra.mxu0 0.0
    %654 = vmatprep.subr.mxu0 0.0
    %655 = vmatpush1.msra.mxu0 0.0
    %656 = vmatprep.subr.mxu0 0.0
    %657 = vmatpush1.msra.mxu0 0.0
    %658 = vmatprep.subr.mxu0 0.0
    %659 = vmatpush1.msra.mxu0 0.0
    %660 = vmatprep.subr.mxu0 0.0
    %661 = vmatpush1.msra.mxu0 0.0
    %662 = vmatprep.subr.mxu0 0.0
    %663 = vmatpush1.msra.mxu0 0.0
    %664 = vmatprep.subr.mxu0 0.0
    %665 = vmatpush1.msra.mxu0 0.0
    %666 = vmatprep.subr.mxu0 0.0
    %667 = vmatpush1.msra.mxu0 0.0
    %668 = vmatprep.subr.mxu0 0.0
    %669 = vmatpush1.msra.mxu0 0.0
    %670 = vmatprep.subr.mxu0 0.0
    %671 = vmatpush1.msra.mxu0 0.0
    %672 = vmatprep.subr.mxu0 0.0
    %673 = vmatpush1.msra.mxu0 %v633
    %674 = vmatprep.subr.mxu0 0.0
    %675 = vmatpush1.msra.mxu0 %v632
    %676 = vmatprep.subr.mxu0 0.0
    %677 = vmatpush1.msra.mxu0 %v631
    %678 = vmatprep.subr.mxu0 0.0
    %679 = vmatpush1.msra.mxu0 %v630
    %680 = vmatprep.subr.mxu0 0.0
    %681 = vmatpush1.msra.mxu0 %v629
    %682 = vmatprep.subr.mxu0 0.0
    %683 = vmatpush1.msra.mxu0 %v628
    %684 = vmatprep.subr.mxu0 0.0
    %685 = vmatpush2.msra.mxu0 0.0
    %686 = vmatprep.subr.mxu0 0.0
    %687 = vmatpush2.msra.mxu0 0.0
    %688 = vmatprep.subr.mxu0 0.0
    %689 = vmatpush2.msra.mxu0 0.0
    %690 = vmatprep.subr.mxu0 0.0
    %691 = vmatpush2.msra.mxu0 0.0
    %692 = vmatprep.subr.mxu0 0.0
    %693 = vmatpush2.msra.mxu0 0.0
    %694 = vmatprep.subr.mxu0 0.0
    %695 = vmatpush2.msra.mxu0 0.0
    %696 = vmatprep.subr.mxu0 0.0
    %697 = vmatpush2.msra.mxu0 0.0
    %698 = vmatprep.subr.mxu0 0.0
    %699 = vmatpush2.msra.mxu0 0.0
    %700 = vmatprep.subr.mxu0 0.0
    %701 = vmatpush2.msra.mxu0 0.0
    %702 = vmatprep.subr.mxu0 0.0
    %703 = vmatpush2.msra.mxu0 0.0
    %704 = vmatprep.subr.mxu0 0.0
    %705 = vmatpush2.msra.mxu0 0.0
    %706 = vmatprep.subr.mxu0 0.0
    %707 = vmatpush2.msra.mxu0 0.0
    %708 = vmatprep.subr.mxu0 0.0
    %709 = vmatpush2.msra.mxu0 0.0
    %710 = vmatprep.subr.mxu0 0.0
    %711 = vmatpush2.msra.mxu0 0.0
    %712 = vmatprep.subr.mxu0 0.0
    %713 = vmatpush2.msra.mxu0 0.0
    %714 = vmatprep.subr.mxu0 0.0
    %715 = vmatpush2.msra.mxu0 0.0
    %716 = vmatprep.mubr.f32.mxu0 0.0
    %717 = vmatmul.mubr.f32.gmra.mxu0 %v650
    %v718 = vpop.f32.mrf.mxu0
    %v719 = vadd.f32 %v647, %v718
    %v720 = vpop.f32.mrf.mxu0
    %721 = vdwg.mxu0
    %v722 = vsel %vm344, %v719, 0.0
    %723 = vadd.xlane.f32.xlu0 %v722
    %v724 = vpop.xlane.xlu0 %723
    %v725 = vmul.f32 %v724, %v348
    %v726 = vsub.f32 %v719, %v725
    %v727 = vmul.f32 %v726, %v726
    %v728 = vsel %vm344, %v727, 0.0
    %729 = vadd.xlane.f32.xlu0 %v728
    %v730 = vpop.xlane.xlu0 %729
    %v731 = vmul.f32 %v730, %v348
    %v732 = vadd.f32 %v731, 1e-05
    %v733 = vrsqrt.pop %v732
    %v734 = vmul.f32 %v726, %v733
    %v736 = vlaneseq
    %v737 = vshrl.u32 %v736, 7
    %v738 = vsub.s32 0, %v737
    %v739 = vrot.slane %v642, %v738
    %v742 = vsel %vm83, %v734, 0
    %744 = vmatprep.subr.mxu0 0.0
    %745 = vmatpush1.msra.mxu0 0.0
    %746 = vmatprep.subr.mxu0 0.0
    %747 = vmatpush1.msra.mxu0 0.0
    %748 = vmatprep.subr.mxu0 0.0
    %749 = vmatpush1.msra.mxu0 0.0
    %750 = vmatprep.subr.mxu0 0.0
    %751 = vmatpush1.msra.mxu0 0.0
    %752 = vmatprep.subr.mxu0 0.0
    %753 = vmatpush1.msra.mxu0 0.0
    %754 = vmatprep.subr.mxu0 0.0
    %755 = vmatpush1.msra.mxu0 0.0
    %756 = vmatprep.subr.mxu0 0.0
    %757 = vmatpush1.msra.mxu0 0.0
    %758 = vmatprep.subr.mxu0 0.0
    %759 = vmatpush1.msra.mxu0 0.0
    %760 = vmatprep.subr.mxu0 0.0
    %761 = vmatpush1.msra.mxu0 0.0
    %762 = vmatprep.subr.mxu0 0.0
    %763 = vmatpush1.msra.mxu0 0.0
    %764 = vmatprep.subr.mxu0 0.0
    %765 = vmatpush1.msra.mxu0 0.0
    %766 = vmatprep.subr.mxu0 0.0
    %767 = vmatpush1.msra.mxu0 0.0
    %768 = vmatprep.subr.mxu0 0.0
    %769 = vmatpush1.msra.mxu0 %v640
    %770 = vmatprep.subr.mxu0 0.0
    %771 = vmatpush1.msra.mxu0 %v639
    %772 = vmatprep.subr.mxu0 0.0
    %773 = vmatpush1.msra.mxu0 %v638
    %774 = vmatprep.subr.mxu0 0.0
    %775 = vmatpush1.msra.mxu0 %v637
    %776 = vmatprep.subr.mxu0 0.0
    %777 = vmatpush2.msra.mxu0 0.0
    %778 = vmatprep.subr.mxu0 0.0
    %779 = vmatpush2.msra.mxu0 0.0
    %780 = vmatprep.subr.mxu0 0.0
    %781 = vmatpush2.msra.mxu0 0.0
    %782 = vmatprep.subr.mxu0 0.0
    %783 = vmatpush2.msra.mxu0 0.0
    %784 = vmatprep.subr.mxu0 0.0
    %785 = vmatpush2.msra.mxu0 0.0
    %786 = vmatprep.subr.mxu0 0.0
    %787 = vmatpush2.msra.mxu0 0.0
    %788 = vmatprep.subr.mxu0 0.0
    %789 = vmatpush2.msra.mxu0 0.0
    %790 = vmatprep.subr.mxu0 0.0
    %791 = vmatpush2.msra.mxu0 0.0
    %792 = vmatprep.subr.mxu0 0.0
    %793 = vmatpush2.msra.mxu0 0.0
    %794 = vmatprep.subr.mxu0 0.0
    %795 = vmatpush2.msra.mxu0 0.0
    %796 = vmatprep.subr.mxu0 0.0
    %797 = vmatpush2.msra.mxu0 0.0
    %798 = vmatprep.subr.mxu0 0.0
    %799 = vmatpush2.msra.mxu0 0.0
    %800 = vmatprep.subr.mxu0 0.0
    %801 = vmatpush2.msra.mxu0 0.0
    %802 = vmatprep.subr.mxu0 0.0
    %803 = vmatpush2.msra.mxu0 0.0
    %804 = vmatprep.subr.mxu0 0.0
    %805 = vmatpush2.msra.mxu0 0.0
    %806 = vmatprep.subr.mxu0 0.0
    %807 = vmatpush2.msra.mxu0 0.0
    %808 = vmatprep.mubr.f32.mxu0 0.0
    %809 = vmatmul.mubr.f32.gmra.mxu0 %v742
    %v810 = vpop.f32.mrf.mxu0
    %v811 = vadd.f32 %v739, %v810
    %v812 = vpop.f32.mrf.mxu0
    %813 = vdwg.mxu0
    %v814 = vadd.f32 %v438, %v811
    %815 = vst.msk [vmem:[#allocation7] sm:$0x3] %vm344, %v626
    %816 = vst.msk [vmem:[#allocation8] sm:$0x3] %vm157, %v814
    // Predicated region
    $region50: #{fused_cross_transformer.1} parent=1 // pred_check
      _
    $region51: #{fused_cross_transformer.1} parent=1 // pred_check_branch
      %818 = sbr.rel (0) target = $region53
    $region52: #{fused_cross_transformer.1} parent=1 // pred_region
      %s820 = ssub.s32 32, 32
      %821 = vsyncadd [#allocation4], %s820
      %s823 = sshll.u32 [#allocation7], 4
      %s824 = int_to_ptr.vmem [resolvable:$true] %s823
      %826 = dma.vmem_to_hbm [thread:$0]  %s824, 32, %s10, [#allocation4]
    $region53: #{fused_cross_transformer.1} parent=1 // pred_fallthru
      _
    // Predicated region
    $region54: #{fused_cross_transformer.1} parent=1 // pred_check
      _
    $region55: #{fused_cross_transformer.1} parent=1 // pred_check_branch
      %828 = sbr.rel (0) target = $region57
    $region56: #{fused_cross_transformer.1} parent=1 // pred_region
      %s830 = ssub.s32 32, 32
      %831 = vsyncadd [#allocation9], %s830
      %s833 = sshll.u32 [#allocation8], 4
      %s834 = int_to_ptr.vmem [resolvable:$true] %s833
      %836 = dma.vmem_to_hbm [thread:$0]  %s834, 32, %s11, [#allocation9]
    $region57: #{fused_cross_transformer.1} parent=1 // pred_fallthru
      _
    // Predicated region
    $region58: #{fused_cross_transformer.1} parent=1 // pred_check
      _
    $region59: #{fused_cross_transformer.1} parent=1 // pred_check_branch
      %838 = sbr.rel (0) target = $region61
    $region60: #{fused_cross_transformer.1} parent=1 // pred_region
      %839 = dma.done [#allocation4], 32
    $region61: #{fused_cross_transformer.1} parent=1 // pred_fallthru
      _
    // Predicated region
    $region62: #{fused_cross_transformer.1} parent=1 // pred_check
      _
    $region63: #{fused_cross_transformer.1} parent=1 // pred_check_branch
      %841 = sbr.rel (0) target = $region65
    $region64: #{fused_cross_transformer.1} parent=1 // pred_region
      %842 = dma.done [#allocation9], 32
    $region65: #{fused_cross_transformer.1} parent=1 // pred_fallthru
      _
    %843 = vsyncpa [#allocation3], 1
    %844 = vsyncpa [#allocation6], 1
    %845 = vsyncpa [#allocation4], 1
    %846 = vsyncpa [#allocation9], 1

</llo_original>
